<compile_context>
chip_gen: v7x
topology: tpu7x:2x2x1
jax: 0.10.0
libtpu: 0.0.40
codegen_flags: <defaults>
</compile_context>

<pallas_src>
import functools

import jax
import jax.numpy as jnp
from jax.experimental import pallas as pl
from jax.experimental.pallas import tpu as pltpu

LANE = 128
SUB = 16  # batch-tile granularity (bf16 sublane packing)


def _round_up(x, m):
    return ((x + m - 1) // m) * m


def tsk_kernel(x_ref, ant_ref, zc_ref, w_ref, b_ref, y_ref, *, n_rule, c_pad):
    """One batch tile of the TSK forward pass.

    x_ref  : [TN, Dp]    f32  input tile; lane D holds the constant 1, other pad lanes are 0
    ant_ref: [2*Dp, R]   f32  [[-0.5*inv_var.T] ; [(centers*inv_var).T]]          (resident)
    zc_ref : [1, R]      f32  -0.5 * sum_d centers^2 * inv_var                    (resident)
    w_ref  : [Dp, R*Cp]  bf16/f32 fused consequent weights; row D of rule r = Wf[r] (resident)
    b_ref  : [1, Cp]     f32  bias                                                 (resident)
    y_ref  : [TN, Cp]    f32  output tile
    """
    x = x_ref[...]                                                       # [TN, Dp] f32

    # ---- antecedent (f32): fused quadratic-form matmul + softmax over rules ----
    xa = jnp.concatenate([x * x, x], axis=-1)                            # [TN, 2*Dp]
    z = jnp.dot(xa, ant_ref[...], preferred_element_type=jnp.float32) + zc_ref[...]
    z = z - jnp.max(z, axis=-1, keepdims=True)
    ez = jnp.exp(z)
    frs = ez * pl.reciprocal(jnp.sum(ez, axis=-1, keepdims=True), approx=True)   # [TN, R]

    # ---- consequent (order-1 TSK): one wide matmul + unrolled per-rule VPU reduce ----
    p = jnp.dot(x.astype(w_ref.dtype), w_ref[...],
                preferred_element_type=jnp.float32)                      # [TN, R*Cp]
    acc = p[:, 0:c_pad] * frs[:, 0:1]
    for r in range(1, n_rule):                                           # R is tiny (4-8)
        acc = acc + p[:, r * c_pad:(r + 1) * c_pad] * frs[:, r:r + 1]
    y_ref[...] = (acc + b_ref[...]).astype(y_ref.dtype)


def tsk_prepare_params(centers, sigmas, wx, wf, b, eps=1e-8,
                       consequent_dtype=jnp.bfloat16):
    """Grid-invariant parameter packing — cache / jit once per weight set."""
    f32 = jnp.float32
    R, D = centers.shape
    C = wx.shape[-1]
    # +1 guarantees a zero pad lane at index D so Wf rides the consequent matmul for free.
    d_pad = _round_up(D + 1, LANE)
    c_pad = _round_up(C, LANE)

    inv_var = 1.0 / (sigmas.astype(f32) ** 2 + eps)                      # [R, D]
    cw = centers.astype(f32) * inv_var                                   # [R, D]
    zc = (-0.5 * jnp.sum(centers.astype(f32) ** 2 * inv_var, axis=-1)).reshape(1, R)

    ant = jnp.zeros((2 * d_pad, R), f32)
    ant = ant.at[:D, :].set(-0.5 * inv_var.T)
    ant = ant.at[d_pad:d_pad + D, :].set(cw.T)

    # Fused consequent weights: wbig[d, r*Cp + c] = Wx[r, d, c]; wbig[D, r*Cp + c] = Wf[r, c]
    wx_p = jnp.zeros((R, d_pad, c_pad), f32).at[:, :D, :C].set(wx.astype(f32))
    wx_p = wx_p.at[:, D, :C].set(wf.astype(f32))
    wbig = jnp.transpose(wx_p, (1, 0, 2)).reshape(d_pad, R * c_pad).astype(consequent_dtype)

    b_p = jnp.zeros((1, c_pad), f32).at[:, :C].set(b.astype(f32))
    return dict(ant=ant, zc=zc, wbig=wbig, bias=b_p,
                D=D, C=C, R=R, d_pad=d_pad, c_pad=c_pad)


def _vmem_bytes(tn, d_pad, c_pad, R, w_bytes):
    """Rough per-step VMEM footprint (resident params x2 + streamed tiles + intermediates)."""
    resident = 2 * d_pad * R * 4 + LANE * 4 + d_pad * R * c_pad * w_bytes + c_pad * 4
    streamed = 2 * tn * d_pad * 4 + 2 * tn * c_pad * 4
    interm = tn * (2 * d_pad * 4 + R * c_pad * (4 + w_bytes) + 4 * c_pad * 4 + 8 * R * 4)
    return 2 * resident + streamed + interm


def tsk_apply(params, x, block_n=512):
    f32 = jnp.float32
    N, D = x.shape
    assert D == params["D"], "feature dim mismatch with prepared params"
    R, C = params["R"], params["C"]
    d_pad, c_pad = params["d_pad"], params["c_pad"]
    w_bytes = jnp.dtype(params["wbig"].dtype).itemsize

    # Batch tile: multiple of 16; cap so larger batches get >= 2 grid steps (both v7x cores).
    tn = min(_round_up(block_n, SUB), _round_up(N, SUB))
    if N > 2 * SUB:
        tn = min(tn, _round_up(-(-N // 2), SUB))
    tn = max(SUB, tn)
    # Keep the per-step working set inside a conservative VMEM budget (v7x: 64 MiB / core).
    budget = 48 << 20
    while tn > SUB and _vmem_bytes(tn, d_pad, c_pad, R, w_bytes) > budget:
        tn = max(SUB, _round_up(tn // 2, SUB))
    # TODO(synk): if the resident fused weights alone exceed the VMEM budget (very large
    # D*R*C), add a grid axis over the R*Cp weight columns instead of keeping them resident.

    n_pad = _round_up(N, tn)
    x_p = jnp.zeros((n_pad, d_pad), f32).at[:N, :D].set(x.astype(f32))
    x_p = x_p.at[:, D].set(1.0)          # constant lane -> Wf folded into the wide matmul

    vmem_limit = int(min(max(int(_vmem_bytes(tn, d_pad, c_pad, R, w_bytes) * 1.25) + (4 << 20),
                             32 << 20), 64 << 20))

    kernel = functools.partial(tsk_kernel, n_rule=R, c_pad=c_pad)
    y_pad = pl.pallas_call(
        kernel,
        out_shape=jax.ShapeDtypeStruct((n_pad, c_pad), f32),
        grid=(n_pad // tn,),
        in_specs=[
            pl.BlockSpec((tn, d_pad), lambda i: (i, 0)),           # X tile (streamed)
            pl.BlockSpec((2 * d_pad, R), lambda i: (0, 0)),        # antecedent RHS (resident)
            pl.BlockSpec((1, R), lambda i: (0, 0)),                # per-rule const (resident)
            pl.BlockSpec((d_pad, R * c_pad), lambda i: (0, 0)),    # fused Wx|Wf    (resident)
            pl.BlockSpec((1, c_pad), lambda i: (0, 0)),            # bias           (resident)
        ],
        out_specs=pl.BlockSpec((tn, c_pad), lambda i: (i, 0)),
        compiler_params=pltpu.CompilerParams(
            dimension_semantics=("parallel",),
            vmem_limit_bytes=vmem_limit),
    )(x_p, params["ant"], params["zc"], params["wbig"], params["bias"])

    return y_pad[:N, :C].astype(x.dtype)


def tsk_forward(x, centers, sigmas, wx, wf, b, eps=1e-8, block_n=512,
                consequent_dtype=jnp.bfloat16):
    params = tsk_prepare_params(centers, sigmas, wx, wf, b, eps=eps,
                                consequent_dtype=consequent_dtype)
    return tsk_apply(params, x, block_n=block_n)


def tsk_reference(x, centers, sigmas, wx, wf, b, eps=1e-8):
    """Pure-JAX mirror of the PyTorch forward (order=1, precons=None, get_frs=False)."""
    diff = x[:, None, :] - centers[None]
    z = -0.5 * jnp.sum(diff * diff / (sigmas[None] ** 2 + eps), axis=-1)
    frs = jax.nn.softmax(z, axis=-1)                                   # [N, R]
    xw = x[:, None, :] * frs[:, :, None]                               # [N, R, D]
    cons_input = jnp.concatenate([xw.reshape(x.shape[0], -1), frs], axis=1)
    W = jnp.concatenate([wx.reshape(-1, wx.shape[-1]), wf], axis=0)    # [(D+1)*R, C]
    return cons_input @ W + b


def _make_inputs(key, N, D, R, C):
    k1, k2, k3, k4, k5, k6 = jax.random.split(key, 6)
    x = jax.random.normal(k1, (N, D), dtype=jnp.float32)
    centers = jax.random.normal(k2, (R, D), dtype=jnp.float32)
    sigmas = 1.0 + 0.1 * jax.random.normal(k3, (R, D), dtype=jnp.float32)
    bound = 1.0 / jnp.sqrt((D + 1) * R)
    wx = jax.random.uniform(k4, (R, D, C), jnp.float32, -bound, bound)
    wf = jax.random.uniform(k5, (R, C), jnp.float32, -bound, bound)
    b = jax.random.uniform(k6, (1, C), jnp.float32, -bound, bound)
    return x, centers, sigmas, wx, wf, b


if __name__ == "__main__":
    key = jax.random.PRNGKey(0)
    kA, kB = jax.random.split(key)

    # Case 1: small shapes, f32 consequent path -> validates exact semantics of the fused
    # quadratic-form antecedent + Wf fold (approx reciprocal allows ~1e-3-level tolerance).
    x, centers, sigmas, wx, wf, b = _make_inputs(kA, N=8, D=16, R=4, C=3)
    y = jax.block_until_ready(tsk_forward(x, centers, sigmas, wx, wf, b,
                                          consequent_dtype=jnp.float32))
    y_ref = tsk_reference(x, centers, sigmas, wx, wf, b)
    assert y.shape == (8, 3)
    assert jnp.allclose(y, y_ref, atol=5e-3, rtol=5e-3), "Pallas kernel mismatch (f32 case)"

    # Case 2: batch tiling (grid > 1), ragged N, default bf16 consequent weights
    # (mixed precision by design -> looser tolerance).
    x2, c2, s2, wx2, wf2, b2 = _make_inputs(kB, N=300, D=20, R=5, C=3)
    y2 = jax.block_until_ready(tsk_forward(x2, c2, s2, wx2, wf2, b2, block_n=128))
    y2_ref = tsk_reference(x2, c2, s2, wx2, wf2, b2)
    assert y2.shape == (300, 3)
    assert jnp.allclose(y2, y2_ref, atol=2e-2, rtol=2e-2), "Pallas kernel mismatch (bf16 tiled case)"

    print("KERNEL_OK")
</pallas_src>

<mosaic_0001>
module attributes {stable_mosaic.version = 11 : i64} {
  func.func @tsk_kernel(%arg0: i32, %arg1: memref<16x128xf32, #tpu.memory_space<vmem>>, %arg2: memref<256x4xf32, #tpu.memory_space<vmem>>, %arg3: memref<1x4xf32, #tpu.memory_space<vmem>>, %arg4: memref<128x512xf32, #tpu.memory_space<vmem>>, %arg5: memref<1x128xf32, #tpu.memory_space<vmem>>, %arg6: memref<16x128xf32, #tpu.memory_space<vmem>>) attributes {dimension_semantics = [#tpu.dimension_semantics<parallel>], iteration_bounds = array<i64: 1>, scalar_prefetch = 0 : i64, scratch_operands = 0 : i64, tpu.core_type = #tpu.core_type<tc>, window_params = [{transform_indices = @transform_0, window_bounds = array<i64: 16, 128>}, {pipeline_mode = #tpu.pipeline_mode<synchronous>, transform_indices = @transform_1, window_bounds = array<i64: 256, 4>}, {pipeline_mode = #tpu.pipeline_mode<synchronous>, transform_indices = @transform_2, window_bounds = array<i64: 1, 4>}, {pipeline_mode = #tpu.pipeline_mode<synchronous>, transform_indices = @transform_3, window_bounds = array<i64: 128, 512>}, {pipeline_mode = #tpu.pipeline_mode<synchronous>, transform_indices = @transform_4, window_bounds = array<i64: 1, 128>}, {transform_indices = @transform_5, window_bounds = array<i64: 16, 128>}]} {
    %c0 = arith.constant 0 : index
    %c0_0 = arith.constant 0 : index
    %0 = vector.load %arg1[%c0, %c0_0] : memref<16x128xf32, #tpu.memory_space<vmem>>, vector<16x128xf32>
    %1 = arith.mulf %0, %0 : vector<16x128xf32>
    %2 = tpu.concatenate %1, %0 in 1 : vector<16x128xf32>, vector<16x128xf32> -> vector<16x256xf32>
    %c0_1 = arith.constant 0 : index
    %c0_2 = arith.constant 0 : index
    %3 = vector.load %arg2[%c0_1, %c0_2] : memref<256x4xf32, #tpu.memory_space<vmem>>, vector<256x4xf32>
    %cst = arith.constant dense<0.000000e+00> : vector<16x4xf32>
    %4 = tpu.matmul %2, %3, %cst {dimension_numbers = #tpu.dot_dimension_numbers<[1], [0], [0], [1], [0, 0, 1, 1], [], []>} : vector<16x256xf32>, vector<256x4xf32>, vector<16x4xf32> -> vector<16x4xf32>
    %c0_3 = arith.constant 0 : index
    %c0_4 = arith.constant 0 : index
    %5 = vector.load %arg3[%c0_3, %c0_4] : memref<1x4xf32, #tpu.memory_space<vmem>>, vector<1x4xf32>
    %6 = vector.broadcast %5 : vector<1x4xf32> to vector<16x4xf32>
    %7 = arith.addf %4, %6 : vector<16x4xf32>
    %cst_5 = arith.constant dense<0xFF800000> : vector<16xf32>
    %8 = vector.multi_reduction <maximumf>, %7, %cst_5 [1] : vector<16x4xf32> to vector<16xf32>
    %9 = vector.shape_cast %8 : vector<16xf32> to vector<16x1xf32>
    %10 = vector.broadcast %9 : vector<16x1xf32> to vector<16x4xf32>
    %11 = arith.subf %7, %10 : vector<16x4xf32>
    %12 = math.exp %11 : vector<16x4xf32>
    %cst_6 = arith.constant dense<0.000000e+00> : vector<16xf32>
    %13 = vector.multi_reduction <add>, %12, %cst_6 [1] : vector<16x4xf32> to vector<16xf32>
    %14 = vector.shape_cast %13 : vector<16xf32> to vector<16x1xf32>
    %15 = tpu.reciprocal %14 {approx = true} : vector<16x1xf32> -> vector<16x1xf32>
    %16 = vector.broadcast %15 : vector<16x1xf32> to vector<16x4xf32>
    %17 = arith.mulf %12, %16 : vector<16x4xf32>
    %c0_7 = arith.constant 0 : index
    %c0_8 = arith.constant 0 : index
    %18 = vector.load %arg4[%c0_7, %c0_8] : memref<128x512xf32, #tpu.memory_space<vmem>>, vector<128x512xf32>
    %cst_9 = arith.constant dense<0.000000e+00> : vector<16x512xf32>
    %19 = tpu.matmul %0, %18, %cst_9 {dimension_numbers = #tpu.dot_dimension_numbers<[1], [0], [0], [1], [0, 0, 1, 1], [], []>} : vector<16x128xf32>, vector<128x512xf32>, vector<16x512xf32> -> vector<16x512xf32>
    %20 = vector.extract_strided_slice %19 {offsets = [0, 0], sizes = [16, 128], strides = [1, 1]} : vector<16x512xf32> to vector<16x128xf32>
    %21 = vector.extract_strided_slice %17 {offsets = [0, 0], sizes = [16, 1], strides = [1, 1]} : vector<16x4xf32> to vector<16x1xf32>
    %22 = vector.broadcast %21 : vector<16x1xf32> to vector<16x128xf32>
    %23 = arith.mulf %20, %22 : vector<16x128xf32>
    %24 = vector.extract_strided_slice %19 {offsets = [0, 128], sizes = [16, 128], strides = [1, 1]} : vector<16x512xf32> to vector<16x128xf32>
    %25 = vector.extract_strided_slice %17 {offsets = [0, 1], sizes = [16, 1], strides = [1, 1]} : vector<16x4xf32> to vector<16x1xf32>
    %26 = vector.broadcast %25 : vector<16x1xf32> to vector<16x128xf32>
    %27 = arith.mulf %24, %26 : vector<16x128xf32>
    %28 = arith.addf %23, %27 : vector<16x128xf32>
    %29 = vector.extract_strided_slice %19 {offsets = [0, 256], sizes = [16, 128], strides = [1, 1]} : vector<16x512xf32> to vector<16x128xf32>
    %30 = vector.extract_strided_slice %17 {offsets = [0, 2], sizes = [16, 1], strides = [1, 1]} : vector<16x4xf32> to vector<16x1xf32>
    %31 = vector.broadcast %30 : vector<16x1xf32> to vector<16x128xf32>
    %32 = arith.mulf %29, %31 : vector<16x128xf32>
    %33 = arith.addf %28, %32 : vector<16x128xf32>
    %34 = vector.extract_strided_slice %19 {offsets = [0, 384], sizes = [16, 128], strides = [1, 1]} : vector<16x512xf32> to vector<16x128xf32>
    %35 = vector.extract_strided_slice %17 {offsets = [0, 3], sizes = [16, 1], strides = [1, 1]} : vector<16x4xf32> to vector<16x1xf32>
    %36 = vector.broadcast %35 : vector<16x1xf32> to vector<16x128xf32>
    %37 = arith.mulf %34, %36 : vector<16x128xf32>
    %38 = arith.addf %33, %37 : vector<16x128xf32>
    %c0_10 = arith.constant 0 : index
    %c0_11 = arith.constant 0 : index
    %39 = vector.load %arg5[%c0_10, %c0_11] : memref<1x128xf32, #tpu.memory_space<vmem>>, vector<1x128xf32>
    %40 = vector.broadcast %39 : vector<1x128xf32> to vector<16x128xf32>
    %41 = arith.addf %38, %40 : vector<16x128xf32>
    %c0_12 = arith.constant 0 : index
    %c0_13 = arith.constant 0 : index
    %42 = vector.load %arg6[%c0_12, %c0_13] : memref<16x128xf32, #tpu.memory_space<vmem>>, vector<16x128xf32>
    tpu.vector_store %arg6[%c0_12, %c0_13], %41 {strides = array<i32>} : memref<16x128xf32, #tpu.memory_space<vmem>>, vector<16x128xf32>,
    return
  }
  func.func @transform_0(%arg0: i32) -> (i32, i32) {
    %c0_i32 = arith.constant 0 : i32
    %c0_i32_0 = arith.constant 0 : i32
    return %arg0, %c0_i32 : i32, i32
  }
  func.func @transform_1(%arg0: i32) -> (i32, i32) {
    %c0_i32 = arith.constant 0 : i32
    %c0_i32_0 = arith.constant 0 : i32
    %c0_i32_1 = arith.constant 0 : i32
    return %c0_i32, %c0_i32_0 : i32, i32
  }
  func.func @transform_2(%arg0: i32) -> (i32, i32) {
    %c0_i32 = arith.constant 0 : i32
    %c0_i32_0 = arith.constant 0 : i32
    %c0_i32_1 = arith.constant 0 : i32
    return %c0_i32, %c0_i32_0 : i32, i32
  }
  func.func @transform_3(%arg0: i32) -> (i32, i32) {
    %c0_i32 = arith.constant 0 : i32
    %c0_i32_0 = arith.constant 0 : i32
    %c0_i32_1 = arith.constant 0 : i32
    return %c0_i32, %c0_i32_0 : i32, i32
  }
  func.func @transform_4(%arg0: i32) -> (i32, i32) {
    %c0_i32 = arith.constant 0 : i32
    %c0_i32_0 = arith.constant 0 : i32
    %c0_i32_1 = arith.constant 0 : i32
    return %c0_i32, %c0_i32_0 : i32, i32
  }
  func.func @transform_5(%arg0: i32) -> (i32, i32) {
    %c0_i32 = arith.constant 0 : i32
    %c0_i32_0 = arith.constant 0 : i32
    return %arg0, %c0_i32 : i32, i32
  }
}

</mosaic_0001>

<llo_original>
// kernel: tpu_custom_call.1
$region0: #{tpu_custom_call.1}
  #allocation0 [shape = 'u32[]', space=smem, size = 0x4, offset = 0x4, fixed_abs, tag = 'smem constant byte address 0x4 - core index']
  #allocation1 [shape = 'u32[144,128]{1,0:T(1,128)}', space=vmem, size = 0x12000, scoped, tag = 'internal scratch']
  %s0 = inlined_call_operand.vmem [shape: f32[16,128], index: 0, kind: input, shape index: {}]
  %s1 = inlined_call_operand.vmem [shape: f32[256,4], index: 1, kind: input, shape index: {}]
  %s2 = inlined_call_operand.vmem [shape: f32[1,4], index: 2, kind: input, shape index: {}]
  %s3 = inlined_call_operand.hbm [shape: f32[128,512], index: 3, kind: input, shape index: {}]
  %s4 = inlined_call_operand.vmem [shape: f32[1,128], index: 4, kind: input, shape index: {}]
  %s5 = inlined_call_operand.hbm [shape: f32[16,128], index: 5, kind: output, shape index: {}]
  %s6 = sld [smem:[#allocation0]]
  $region34: #{tpu_custom_call.1} parent=0
    _
  %s8 = ssub.s32 1, %s6
  %s9 = scalar_select 0, %s8, %s6
  $region1: #{tpu_custom_call.1} parent=0
    #allocation2 [shape = 'u8[262144]{0}', space=vmem, size = 0x40000, scoped, tag = 'input window, operand 3, single buffered']
    #allocation3 [shape = 's32[1]{0}', space=sflag, size = 0x4, scoped, tag = 'scoped memory for tpu_custom_call.1']
    #allocation4 [shape = 's32[1]{0}', space=sflag, size = 0x4, scoped, tag = 'scoped memory for tpu_custom_call.1']
    #allocation5 [shape = 'u8[8192]{0}', space=vmem, size = 0x2000, scoped, tag = 'output window, operand 0, single buffered']
    %10 = vsyncpa [#allocation3], 0
    %11 = vsyncpa [#allocation4], 0
    // Predicated region
    $region2: #{tpu_custom_call.1} parent=1 // pred_check
      _
    $region3: #{tpu_custom_call.1} parent=1 // pred_check_branch
      %13 = sbr.rel (0) target = $region5
    $region4: #{tpu_custom_call.1} parent=1 // pred_region
      _
    $region5: #{tpu_custom_call.1} parent=1 // pred_fallthru
      _
    // Predicated region
    $region6: #{tpu_custom_call.1} parent=1 // pred_check
      _
    $region7: #{tpu_custom_call.1} parent=1 // pred_check_branch
      %15 = sbr.rel (0) target = $region9
    $region8: #{tpu_custom_call.1} parent=1 // pred_region
      _
    $region9: #{tpu_custom_call.1} parent=1 // pred_fallthru
      _
    // Predicated region
    $region10: #{tpu_custom_call.1} parent=1 // pred_check
      _
    $region11: #{tpu_custom_call.1} parent=1 // pred_check_branch
      %17 = sbr.rel (0) target = $region13
    $region12: #{tpu_custom_call.1} parent=1 // pred_region
      _
    $region13: #{tpu_custom_call.1} parent=1 // pred_fallthru
      _
    // Predicated region
    $region14: #{tpu_custom_call.1} parent=1 // pred_check
      _
    $region15: #{tpu_custom_call.1} parent=1 // pred_check_branch
      %19 = sbr.rel (0) target = $region17
    $region16: #{tpu_custom_call.1} parent=1 // pred_region
      %s21 = ssub.s32 8192, 8192
      %22 = vsyncadd [#allocation3], %s21
      %s23 = sshll.u32 [#allocation2], 4
      %s24 = int_to_ptr.vmem [resolvable:$true] %s23
      %29 = dma.hbm_to_vmem [thread:$0]  %s3, 8192, %s24, [#allocation3], 512, 512, 32
    $region17: #{tpu_custom_call.1} parent=1 // pred_fallthru
      _
    // Predicated region
    $region18: #{tpu_custom_call.1} parent=1 // pred_check
      _
    $region19: #{tpu_custom_call.1} parent=1 // pred_check_branch
      %31 = sbr.rel (0) target = $region21
    $region20: #{tpu_custom_call.1} parent=1 // pred_region
      _
    $region21: #{tpu_custom_call.1} parent=1 // pred_fallthru
      _
    // Predicated region
    $region22: #{tpu_custom_call.1} parent=1 // pred_check
      _
    $region23: #{tpu_custom_call.1} parent=1 // pred_check_branch
      %33 = sbr.rel (0) target = $region25
    $region24: #{tpu_custom_call.1} parent=1 // pred_region
      %34 = dma.done [#allocation3], 8192
    $region25: #{tpu_custom_call.1} parent=1 // pred_fallthru
      _
    %v35 = vld [vmem:[%s0] sm:$0xff]
    %v36 = vld [vmem:[%s0 + $0x8] sm:$0xff]
    %v37 = vmul.f32 %v35, %v35
    %v38 = vmul.f32 %v36, %v36
    %v39 = vld [vmem:[%s1] sm:$0xff]
    %v40 = vld [vmem:[%s1 + $0x8] sm:$0xff]
    %v41 = vld [vmem:[%s1 + $0x10] sm:$0xff]
    %v42 = vld [vmem:[%s1 + $0x18] sm:$0xff]
    %v43 = vld [vmem:[%s1 + $0x20] sm:$0xff]
    %v44 = vld [vmem:[%s1 + $0x28] sm:$0xff]
    %v45 = vld [vmem:[%s1 + $0x30] sm:$0xff]
    %v46 = vld [vmem:[%s1 + $0x38] sm:$0xff]
    %v47 = vld [vmem:[%s1 + $0x40] sm:$0xff]
    %v48 = vld [vmem:[%s1 + $0x48] sm:$0xff]
    %v49 = vld [vmem:[%s1 + $0x50] sm:$0xff]
    %v50 = vld [vmem:[%s1 + $0x58] sm:$0xff]
    %v51 = vld [vmem:[%s1 + $0x60] sm:$0xff]
    %v52 = vld [vmem:[%s1 + $0x68] sm:$0xff]
    %v53 = vld [vmem:[%s1 + $0x70] sm:$0xff]
    %v54 = vld [vmem:[%s1 + $0x78] sm:$0xff]
    %v55 = vld [vmem:[%s1 + $0x80] sm:$0xff]
    %v56 = vld [vmem:[%s1 + $0x88] sm:$0xff]
    %v57 = vld [vmem:[%s1 + $0x90] sm:$0xff]
    %v58 = vld [vmem:[%s1 + $0x98] sm:$0xff]
    %v59 = vld [vmem:[%s1 + $0xa0] sm:$0xff]
    %v60 = vld [vmem:[%s1 + $0xa8] sm:$0xff]
    %v61 = vld [vmem:[%s1 + $0xb0] sm:$0xff]
    %v62 = vld [vmem:[%s1 + $0xb8] sm:$0xff]
    %v63 = vld [vmem:[%s1 + $0xc0] sm:$0xff]
    %v64 = vld [vmem:[%s1 + $0xc8] sm:$0xff]
    %v65 = vld [vmem:[%s1 + $0xd0] sm:$0xff]
    %v66 = vld [vmem:[%s1 + $0xd8] sm:$0xff]
    %v67 = vld [vmem:[%s1 + $0xe0] sm:$0xff]
    %v68 = vld [vmem:[%s1 + $0xe8] sm:$0xff]
    %v69 = vld [vmem:[%s1 + $0xf0] sm:$0xff]
    %v70 = vld [vmem:[%s1 + $0xf8] sm:$0xff]
    %v71 = vld [vmem:[%s2] sm:$0x1]
    %v73 = vlaneseq
    %v74 = vshrl.u32 %v73, 7
    %v75 = vsub.s32 0, %v74
    %v76 = vrot.slane %v71, %v75
    %78 = vmatprep.subr.mxu0 0.0
    %79 = vmatpush1.msra.mxu0 %v39
    %80 = vmatprep.subr.mxu0 0.0
    %81 = vmatpush1.msra.mxu0 %v40
    %82 = vmatprep.subr.mxu0 0.0
    %83 = vmatpush1.msra.mxu0 %v41
    %84 = vmatprep.subr.mxu0 0.0
    %85 = vmatpush1.msra.mxu0 %v42
    %86 = vmatprep.subr.mxu0 0.0
    %87 = vmatpush1.msra.mxu0 %v43
    %88 = vmatprep.subr.mxu0 0.0
    %89 = vmatpush1.msra.mxu0 %v44
    %90 = vmatprep.subr.mxu0 0.0
    %91 = vmatpush1.msra.mxu0 %v45
    %92 = vmatprep.subr.mxu0 0.0
    %93 = vmatpush1.msra.mxu0 %v46
    %94 = vmatprep.subr.mxu0 0.0
    %95 = vmatpush1.msra.mxu0 %v47
    %96 = vmatprep.subr.mxu0 0.0
    %97 = vmatpush1.msra.mxu0 %v48
    %98 = vmatprep.subr.mxu0 0.0
    %99 = vmatpush1.msra.mxu0 %v49
    %100 = vmatprep.subr.mxu0 0.0
    %101 = vmatpush1.msra.mxu0 %v50
    %102 = vmatprep.subr.mxu0 0.0
    %103 = vmatpush1.msra.mxu0 %v51
    %104 = vmatprep.subr.mxu0 0.0
    %105 = vmatpush1.msra.mxu0 %v52
    %106 = vmatprep.subr.mxu0 0.0
    %107 = vmatpush1.msra.mxu0 %v53
    %108 = vmatprep.subr.mxu0 0.0
    %109 = vmatpush1.msra.mxu0 %v54
    %110 = vmatprep.subr.mxu0 0.0
    %111 = vmatpush1.msra.mxu0 %v55
    %112 = vmatprep.subr.mxu0 0.0
    %113 = vmatpush1.msra.mxu0 %v56
    %114 = vmatprep.subr.mxu0 0.0
    %115 = vmatpush1.msra.mxu0 %v57
    %116 = vmatprep.subr.mxu0 0.0
    %117 = vmatpush1.msra.mxu0 %v58
    %118 = vmatprep.subr.mxu0 0.0
    %119 = vmatpush1.msra.mxu0 %v59
    %120 = vmatprep.subr.mxu0 0.0
    %121 = vmatpush1.msra.mxu0 %v60
    %122 = vmatprep.subr.mxu0 0.0
    %123 = vmatpush1.msra.mxu0 %v61
    %124 = vmatprep.subr.mxu0 0.0
    %125 = vmatpush1.msra.mxu0 %v62
    %126 = vmatprep.subr.mxu0 0.0
    %127 = vmatpush1.msra.mxu0 %v63
    %128 = vmatprep.subr.mxu0 0.0
    %129 = vmatpush1.msra.mxu0 %v64
    %130 = vmatprep.subr.mxu0 0.0
    %131 = vmatpush1.msra.mxu0 %v65
    %132 = vmatprep.subr.mxu0 0.0
    %133 = vmatpush1.msra.mxu0 %v66
    %134 = vmatprep.subr.mxu0 0.0
    %135 = vmatpush1.msra.mxu0 %v67
    %136 = vmatprep.subr.mxu0 0.0
    %137 = vmatpush1.msra.mxu0 %v68
    %138 = vmatprep.subr.mxu0 0.0
    %139 = vmatpush1.msra.mxu0 %v69
    %140 = vmatprep.subr.mxu0 0.0
    %141 = vmatpush1.msra.mxu0 %v70
    %142 = vmatprep.mubr.f32.mxu0 %v35
    %143 = vmatmul.mubr.f32.gmra.mrb[0].mxu0 %v37
    %v144 = vpop.f32.mrb[0].mxu0
    %v145 = vadd.f32 %v76, %v144
    %v146 = vpop.f32.mrb[0].mxu0
    %147 = vmatprep.mubr.f32.mxu0 %v36
    %148 = vmatmul.mubr.f32.gmra.mrb[0].mxu0 %v38
    %v149 = vpop.f32.mrb[0].mxu0
    %v150 = vadd.f32 %v76, %v149
    %v151 = vpop.f32.mrb[0].mxu0
    %152 = vdwg.mxu0
    %vm153 = vcmask 31744
    %v154 = vsel %vm153, %v145, -inf
    %155 = vmax.xlane.f32.xlu0 %v154
    %v156 = vpop.xlane.xlu0 %155
    %v157 = vsel %vm153, %v150, -inf
    %158 = vmax.xlane.f32.xlu0 %v157
    %v159 = vpop.xlane.xlu0 %158
    %v160 = vsub.f32 %v145, %v156
    %v161 = vsub.f32 %v150, %v159
    %v162 = vmul.f32 %v160, 1.442695
    %v163 = vpow.pop %v162
    %v164 = vmul.f32 %v161, 1.442695
    %v165 = vpow.pop %v164
    %v166 = vsel %vm153, %v163, 0.0
    %167 = vadd.xlane.f32.xlu0 %v166
    %v168 = vpop.xlane.xlu0 %167
    %v169 = vsel %vm153, %v165, 0.0
    %170 = vadd.xlane.f32.xlu0 %v169
    %v171 = vpop.xlane.xlu0 %170
    %v172 = vrcp.pop %v168
    %v173 = vrcp.pop %v171
    %v174 = vmul.f32 %v163, %v172
    %v175 = vmul.f32 %v165, %v173
    %v176 = vld [vmem:[#allocation2] sm:$0xff]
    %v177 = vld [vmem:[#allocation2 + $0x8] sm:$0xff]
    %v178 = vld [vmem:[#allocation2 + $0x10] sm:$0xff]
    %v179 = vld [vmem:[#allocation2 + $0x18] sm:$0xff]
    %v180 = vld [vmem:[#allocation2 + $0x20] sm:$0xff]
    %v181 = vld [vmem:[#allocation2 + $0x28] sm:$0xff]
    %v182 = vld [vmem:[#allocation2 + $0x30] sm:$0xff]
    %v183 = vld [vmem:[#allocation2 + $0x38] sm:$0xff]
    %v184 = vld [vmem:[#allocation2 + $0x40] sm:$0xff]
    %v185 = vld [vmem:[#allocation2 + $0x48] sm:$0xff]
    %v186 = vld [vmem:[#allocation2 + $0x50] sm:$0xff]
    %v187 = vld [vmem:[#allocation2 + $0x58] sm:$0xff]
    %v188 = vld [vmem:[#allocation2 + $0x60] sm:$0xff]
    %v189 = vld [vmem:[#allocation2 + $0x68] sm:$0xff]
    %v190 = vld [vmem:[#allocation2 + $0x70] sm:$0xff]
    %v191 = vld [vmem:[#allocation2 + $0x78] sm:$0xff]
    %v192 = vld [vmem:[#allocation2 + $0x80] sm:$0xff]
    %v193 = vld [vmem:[#allocation2 + $0x88] sm:$0xff]
    %v194 = vld [vmem:[#allocation2 + $0x90] sm:$0xff]
    %v195 = vld [vmem:[#allocation2 + $0x98] sm:$0xff]
    %v196 = vld [vmem:[#allocation2 + $0xa0] sm:$0xff]
    %v197 = vld [vmem:[#allocation2 + $0xa8] sm:$0xff]
    %v198 = vld [vmem:[#allocation2 + $0xb0] sm:$0xff]
    %v199 = vld [vmem:[#allocation2 + $0xb8] sm:$0xff]
    %v200 = vld [vmem:[#allocation2 + $0xc0] sm:$0xff]
    %v201 = vld [vmem:[#allocation2 + $0xc8] sm:$0xff]
    %v202 = vld [vmem:[#allocation2 + $0xd0] sm:$0xff]
    %v203 = vld [vmem:[#allocation2 + $0xd8] sm:$0xff]
    %v204 = vld [vmem:[#allocation2 + $0xe0] sm:$0xff]
    %v205 = vld [vmem:[#allocation2 + $0xe8] sm:$0xff]
    %v206 = vld [vmem:[#allocation2 + $0xf0] sm:$0xff]
    %v207 = vld [vmem:[#allocation2 + $0xf8] sm:$0xff]
    %v208 = vld [vmem:[#allocation2 + $0x100] sm:$0xff]
    %v209 = vld [vmem:[#allocation2 + $0x108] sm:$0xff]
    %v210 = vld [vmem:[#allocation2 + $0x110] sm:$0xff]
    %v211 = vld [vmem:[#allocation2 + $0x118] sm:$0xff]
    %v212 = vld [vmem:[#allocation2 + $0x120] sm:$0xff]
    %v213 = vld [vmem:[#allocation2 + $0x128] sm:$0xff]
    %v214 = vld [vmem:[#allocation2 + $0x130] sm:$0xff]
    %v215 = vld [vmem:[#allocation2 + $0x138] sm:$0xff]
    %v216 = vld [vmem:[#allocation2 + $0x140] sm:$0xff]
    %v217 = vld [vmem:[#allocation2 + $0x148] sm:$0xff]
    %v218 = vld [vmem:[#allocation2 + $0x150] sm:$0xff]
    %v219 = vld [vmem:[#allocation2 + $0x158] sm:$0xff]
    %v220 = vld [vmem:[#allocation2 + $0x160] sm:$0xff]
    %v221 = vld [vmem:[#allocation2 + $0x168] sm:$0xff]
    %v222 = vld [vmem:[#allocation2 + $0x170] sm:$0xff]
    %v223 = vld [vmem:[#allocation2 + $0x178] sm:$0xff]
    %v224 = vld [vmem:[#allocation2 + $0x180] sm:$0xff]
    %v225 = vld [vmem:[#allocation2 + $0x188] sm:$0xff]
    %v226 = vld [vmem:[#allocation2 + $0x190] sm:$0xff]
    %v227 = vld [vmem:[#allocation2 + $0x198] sm:$0xff]
    %v228 = vld [vmem:[#allocation2 + $0x1a0] sm:$0xff]
    %v229 = vld [vmem:[#allocation2 + $0x1a8] sm:$0xff]
    %v230 = vld [vmem:[#allocation2 + $0x1b0] sm:$0xff]
    %v231 = vld [vmem:[#allocation2 + $0x1b8] sm:$0xff]
    %v232 = vld [vmem:[#allocation2 + $0x1c0] sm:$0xff]
    %v233 = vld [vmem:[#allocation2 + $0x1c8] sm:$0xff]
    %v234 = vld [vmem:[#allocation2 + $0x1d0] sm:$0xff]
    %v235 = vld [vmem:[#allocation2 + $0x1d8] sm:$0xff]
    %v236 = vld [vmem:[#allocation2 + $0x1e0] sm:$0xff]
    %v237 = vld [vmem:[#allocation2 + $0x1e8] sm:$0xff]
    %v238 = vld [vmem:[#allocation2 + $0x1f0] sm:$0xff]
    %v239 = vld [vmem:[#allocation2 + $0x1f8] sm:$0xff]
    %240 = vmatprep.subr.mxu0 %v177
    %241 = vmatpush1.msra.mxu0 %v176
    %242 = vmatprep.subr.mxu0 %v181
    %243 = vmatpush1.msra.mxu0 %v180
    %244 = vmatprep.subr.mxu0 %v185
    %245 = vmatpush1.msra.mxu0 %v184
    %246 = vmatprep.subr.mxu0 %v189
    %247 = vmatpush1.msra.mxu0 %v188
    %248 = vmatprep.subr.mxu0 %v193
    %249 = vmatpush1.msra.mxu0 %v192
    %250 = vmatprep.subr.mxu0 %v197
    %251 = vmatpush1.msra.mxu0 %v196
    %252 = vmatprep.subr.mxu0 %v201
    %253 = vmatpush1.msra.mxu0 %v200
    %254 = vmatprep.subr.mxu0 %v205
    %255 = vmatpush1.msra.mxu0 %v204
    %256 = vmatprep.subr.mxu0 %v209
    %257 = vmatpush1.msra.mxu0 %v208
    %258 = vmatprep.subr.mxu0 %v213
    %259 = vmatpush1.msra.mxu0 %v212
    %260 = vmatprep.subr.mxu0 %v217
    %261 = vmatpush1.msra.mxu0 %v216
    %262 = vmatprep.subr.mxu0 %v221
    %263 = vmatpush1.msra.mxu0 %v220
    %264 = vmatprep.subr.mxu0 %v225
    %265 = vmatpush1.msra.mxu0 %v224
    %266 = vmatprep.subr.mxu0 %v229
    %267 = vmatpush1.msra.mxu0 %v228
    %268 = vmatprep.subr.mxu0 %v233
    %269 = vmatpush1.msra.mxu0 %v232
    %270 = vmatprep.subr.mxu0 %v237
    %271 = vmatpush1.msra.mxu0 %v236
    %272 = vmatprep.subr.mxu0 0.0
    %273 = vmatpush1.msra.mxu0 0.0
    %274 = vmatprep.subr.mxu0 0.0
    %275 = vmatpush1.msra.mxu0 0.0
    %276 = vmatprep.subr.mxu0 0.0
    %277 = vmatpush1.msra.mxu0 0.0
    %278 = vmatprep.subr.mxu0 0.0
    %279 = vmatpush1.msra.mxu0 0.0
    %280 = vmatprep.subr.mxu0 0.0
    %281 = vmatpush1.msra.mxu0 0.0
    %282 = vmatprep.subr.mxu0 0.0
    %283 = vmatpush1.msra.mxu0 0.0
    %284 = vmatprep.subr.mxu0 0.0
    %285 = vmatpush1.msra.mxu0 0.0
    %286 = vmatprep.subr.mxu0 0.0
    %287 = vmatpush1.msra.mxu0 0.0
    %288 = vmatprep.subr.mxu0 0.0
    %289 = vmatpush1.msra.mxu0 0.0
    %290 = vmatprep.subr.mxu0 0.0
    %291 = vmatpush1.msra.mxu0 0.0
    %292 = vmatprep.subr.mxu0 0.0
    %293 = vmatpush1.msra.mxu0 0.0
    %294 = vmatprep.subr.mxu0 0.0
    %295 = vmatpush1.msra.mxu0 0.0
    %296 = vmatprep.subr.mxu0 0.0
    %297 = vmatpush1.msra.mxu0 0.0
    %298 = vmatprep.subr.mxu0 0.0
    %299 = vmatpush1.msra.mxu0 0.0
    %300 = vmatprep.subr.mxu0 0.0
    %301 = vmatpush1.msra.mxu0 0.0
    %302 = vmatprep.subr.mxu0 0.0
    %303 = vmatpush1.msra.mxu0 0.0
    %304 = vmatprep.mubr.f32.mxu0 0.0
    %305 = vmatmul.mubr.f32.gmra.mrb[0].mxu0 %v35
    %v306 = vpop.f32.mrb[0].mxu0
    %v307 = vadd.f32 0.0, %v306
    %v308 = vpop.f32.mrb[0].mxu0
    %v309 = vadd.f32 0.0, %v308
    %310 = vmatprep.mubr.f32.mxu0 0.0
    %311 = vmatmul.mubr.f32.gmra.mrb[0].mxu0 %v36
    %v312 = vpop.f32.mrb[0].mxu0
    %v313 = vadd.f32 0.0, %v312
    %v314 = vpop.f32.mrb[0].mxu0
    %v315 = vadd.f32 0.0, %v314
    %316 = vdwg.mxu0
    %317 = vmatprep.subr.mxu0 %v179
    %318 = vmatpush1.msra.mxu0 %v178
    %319 = vmatprep.subr.mxu0 %v183
    %320 = vmatpush1.msra.mxu0 %v182
    %321 = vmatprep.subr.mxu0 %v187
    %322 = vmatpush1.msra.mxu0 %v186
    %323 = vmatprep.subr.mxu0 %v191
    %324 = vmatpush1.msra.mxu0 %v190
    %325 = vmatprep.subr.mxu0 %v195
    %326 = vmatpush1.msra.mxu0 %v194
    %327 = vmatprep.subr.mxu0 %v199
    %328 = vmatpush1.msra.mxu0 %v198
    %329 = vmatprep.subr.mxu0 %v203
    %330 = vmatpush1.msra.mxu0 %v202
    %331 = vmatprep.subr.mxu0 %v207
    %332 = vmatpush1.msra.mxu0 %v206
    %333 = vmatprep.subr.mxu0 %v211
    %334 = vmatpush1.msra.mxu0 %v210
    %335 = vmatprep.subr.mxu0 %v215
    %336 = vmatpush1.msra.mxu0 %v214
    %337 = vmatprep.subr.mxu0 %v219
    %338 = vmatpush1.msra.mxu0 %v218
    %339 = vmatprep.subr.mxu0 %v223
    %340 = vmatpush1.msra.mxu0 %v222
    %341 = vmatprep.subr.mxu0 %v227
    %342 = vmatpush1.msra.mxu0 %v226
    %343 = vmatprep.subr.mxu0 %v231
    %344 = vmatpush1.msra.mxu0 %v230
    %345 = vmatprep.subr.mxu0 %v235
    %346 = vmatpush1.msra.mxu0 %v234
    %347 = vmatprep.subr.mxu0 %v239
    %348 = vmatpush1.msra.mxu0 %v238
    %349 = vmatprep.subr.mxu0 0.0
    %350 = vmatpush1.msra.mxu0 0.0
    %351 = vmatprep.subr.mxu0 0.0
    %352 = vmatpush1.msra.mxu0 0.0
    %353 = vmatprep.subr.mxu0 0.0
    %354 = vmatpush1.msra.mxu0 0.0
    %355 = vmatprep.subr.mxu0 0.0
    %356 = vmatpush1.msra.mxu0 0.0
    %357 = vmatprep.subr.mxu0 0.0
    %358 = vmatpush1.msra.mxu0 0.0
    %359 = vmatprep.subr.mxu0 0.0
    %360 = vmatpush1.msra.mxu0 0.0
    %361 = vmatprep.subr.mxu0 0.0
    %362 = vmatpush1.msra.mxu0 0.0
    %363 = vmatprep.subr.mxu0 0.0
    %364 = vmatpush1.msra.mxu0 0.0
    %365 = vmatprep.subr.mxu0 0.0
    %366 = vmatpush1.msra.mxu0 0.0
    %367 = vmatprep.subr.mxu0 0.0
    %368 = vmatpush1.msra.mxu0 0.0
    %369 = vmatprep.subr.mxu0 0.0
    %370 = vmatpush1.msra.mxu0 0.0
    %371 = vmatprep.subr.mxu0 0.0
    %372 = vmatpush1.msra.mxu0 0.0
    %373 = vmatprep.subr.mxu0 0.0
    %374 = vmatpush1.msra.mxu0 0.0
    %375 = vmatprep.subr.mxu0 0.0
    %376 = vmatpush1.msra.mxu0 0.0
    %377 = vmatprep.subr.mxu0 0.0
    %378 = vmatpush1.msra.mxu0 0.0
    %379 = vmatprep.subr.mxu0 0.0
    %380 = vmatpush1.msra.mxu0 0.0
    %381 = vmatprep.mubr.f32.mxu0 0.0
    %382 = vmatmul.mubr.f32.gmra.mrb[0].mxu0 %v35
    %v383 = vpop.f32.mrb[0].mxu0
    %v384 = vadd.f32 0.0, %v383
    %v385 = vpop.f32.mrb[0].mxu0
    %v386 = vadd.f32 0.0, %v385
    %387 = vmatprep.mubr.f32.mxu0 0.0
    %388 = vmatmul.mubr.f32.gmra.mrb[0].mxu0 %v36
    %v389 = vpop.f32.mrb[0].mxu0
    %v390 = vadd.f32 0.0, %v389
    %v391 = vpop.f32.mrb[0].mxu0
    %v392 = vadd.f32 0.0, %v391
    %393 = vdwg.mxu0
    %395 = vset.pattern.permute.xlu0 0
    %396 = vperm.xlu0 %395, %v174
    %v397 = vpop.permute.xlu0 %396
    %400 = vset.pattern.permute.xlu0 0
    %401 = vperm.xlu0 %400, %v175
    %v402 = vpop.permute.xlu0 %401
    %v404 = vmul.f32 %v307, %v397
    %v405 = vmul.f32 %v313, %v402
    %406 = vset.pattern.permute.xlu0 1
    %407 = vperm.xlu0 %406, %v174
    %v408 = vpop.permute.xlu0 %407
    %410 = vset.pattern.permute.xlu0 1
    %411 = vperm.xlu0 %410, %v175
    %v412 = vpop.permute.xlu0 %411
    %v414 = vmul.f32 %v309, %v408
    %v415 = vmul.f32 %v315, %v412
    %v416 = vadd.f32 %v404, %v414
    %v417 = vadd.f32 %v405, %v415
    %418 = vset.pattern.permute.xlu0 2
    %419 = vperm.xlu0 %418, %v174
    %v420 = vpop.permute.xlu0 %419
    %422 = vset.pattern.permute.xlu0 2
    %423 = vperm.xlu0 %422, %v175
    %v424 = vpop.permute.xlu0 %423
    %v426 = vmul.f32 %v384, %v420
    %v427 = vmul.f32 %v390, %v424
    %v428 = vadd.f32 %v416, %v426
    %v429 = vadd.f32 %v417, %v427
    %430 = vset.pattern.permute.xlu0 3
    %431 = vperm.xlu0 %430, %v174
    %v432 = vpop.permute.xlu0 %431
    %434 = vset.pattern.permute.xlu0 3
    %435 = vperm.xlu0 %434, %v175
    %v436 = vpop.permute.xlu0 %435
    %v438 = vmul.f32 %v386, %v432
    %v439 = vmul.f32 %v392, %v436
    %v440 = vadd.f32 %v428, %v438
    %v441 = vadd.f32 %v429, %v439
    %v442 = vld [vmem:[%s4] sm:$0x1]
    %v444 = vlaneseq
    %v445 = vshrl.u32 %v444, 7
    %v446 = vsub.s32 0, %v445
    %v447 = vrot.slane %v442, %v446
    %v449 = vadd.f32 %v440, %v447
    %v450 = vadd.f32 %v441, %v447
    %451 = vst [vmem:[#allocation5] sm:$0xff] %v449
    %452 = vst [vmem:[#allocation5 + $0x8] sm:$0xff] %v450
    // Predicated region
    $region26: #{tpu_custom_call.1} parent=1 // pred_check
      _
    $region27: #{tpu_custom_call.1} parent=1 // pred_check_branch
      %454 = sbr.rel (0) target = $region29
    $region28: #{tpu_custom_call.1} parent=1 // pred_region
      %s456 = ssub.s32 256, 256
      %457 = vsyncadd [#allocation4], %s456
      %s458 = sshll.u32 [#allocation5], 4
      %s459 = int_to_ptr.vmem [resolvable:$true] %s458
      %464 = dma.vmem_to_hbm [thread:$0]  %s459, 256, %s5, [#allocation4], 128, 128, 8
    $region29: #{tpu_custom_call.1} parent=1 // pred_fallthru
      _
    // Predicated region
    $region30: #{tpu_custom_call.1} parent=1 // pred_check
      _
    $region31: #{tpu_custom_call.1} parent=1 // pred_check_branch
      %466 = sbr.rel (0) target = $region33
    $region32: #{tpu_custom_call.1} parent=1 // pred_region
      %467 = dma.done [#allocation4], 256
    $region33: #{tpu_custom_call.1} parent=1 // pred_fallthru
      _
    %468 = vsyncpa [#allocation3], 1
    %469 = vsyncpa [#allocation4], 1

</llo_original>
